<compile_context>
chip_gen: v7x
topology: tpu7x:2x2x1
jax: 0.10.0
libtpu: 0.0.40
codegen_flags: <defaults>
</compile_context>

<pallas_src>
import functools

import numpy as np
import jax
import jax.numpy as jnp
from jax import lax
from jax.experimental import pallas as pl
from jax.experimental.pallas import tpu as pltpu

N_EMBD = 64  # fixed by the module (n_embd = 64)


def prepare_head_params(wk, wq, wv):
    """Fuse the projection weights ONCE at init/weight-load time.

    wk/wq/wv: (C, H) such that projection == x @ W (i.e. nn.Linear.weight.T).
    Returns:
      w_kq: (C, 2H) = [Wk | Wq * C**-0.5]   (scale folded into the Q columns;
                                             C**-0.5 is intentional, bug-for-bug)
      w_vt: (H, C)  = Wv^T                  (so V is produced in (H, Bb*T) layout)
    """
    C = wk.shape[0]
    w_kq = jnp.concatenate([wk, wq * (C ** -0.5)], axis=1)
    w_vt = wv.T
    return w_kq, w_vt


@functools.lru_cache(maxsize=None)
def _block_causal_bias(batch_block, seq_len):
    """Additive bias (0 / -inf) for block-diagonal (per batch) causal attention.

    This is the flattened analogue of the module's registered `tril` buffer,
    built once on host and cached."""
    bt = batch_block * seq_len
    i = np.arange(bt)
    same_batch = (i[:, None] // seq_len) == (i[None, :] // seq_len)
    causal = i[None, :] <= i[:, None]
    bias = np.where(same_batch & causal, 0.0, -np.inf).astype(np.float32)
    return jnp.asarray(bias)


def _head_kernel(x_ref, wkq_ref, wvt_ref, bias_ref, o_ref, wei_ref=None):
    # x_ref:    (Bb, T, C)
    # wkq_ref:  (C, 2H)      = [Wk | Wq * C**-0.5]
    # wvt_ref:  (H, C)       = Wv^T
    # bias_ref: (Bb*T, Bb*T) block-diagonal causal additive mask (0 / -inf)
    # o_ref:    (1, H, Bb*T) transposed, lane-dense output slab
    # wei_ref:  (1, Bb*T, Bb*T) or absent (opt-in attention-weights export)
    Bb, T, C = x_ref.shape
    H = wvt_ref.shape[0]
    BT = Bb * T

    x2 = x_ref[...].reshape(BT, C)          # leading-dim merge only: free

    # Fused K/Q projection: one MXU push, f32 accumulation.
    kq = jnp.dot(x2, wkq_ref[...], preferred_element_type=jnp.float32)  # (BT, 2H)
    k = kq[:, :H]
    q = kq[:, H:]

    # V projection produced directly in transposed (H, BT) layout.
    # dot_general contracting the last dims is MXU transpose_rhs-native.
    v_t = lax.dot_general(wvt_ref[...], x2, (((1,), (1,)), ((), ())),
                          preferred_element_type=jnp.float32)           # (H, BT)

    # Flattened scores: ONE (BT, BT) MXU tile instead of Bb tiny batched matmuls.
    # Scale C**-0.5 is already folded into the Wq columns.
    s = lax.dot_general(q, k, (((1,), (1,)), ((), ())),
                        preferred_element_type=jnp.float32)             # (BT, BT)

    # Block-diagonal + causal mask (additive 0 / -inf, precomputed).
    s = s + bias_ref[...]

    # Numerically stable softmax over keys (last axis).
    m = jnp.max(s, axis=-1, keepdims=True)
    p = jnp.exp(s - m)
    denom = jnp.sum(p, axis=-1, keepdims=True)

    if wei_ref is None:
        # Hot path: normalization via the EUP approximate reciprocal (free slot).
        p = p * pl.reciprocal(denom, approx=True)
    else:
        # Export path: exact divide so the exported attention weights match
        # F.softmax bit-for-bit-ish (PyTorch weights_matrices parity).
        p = p / denom
        wei_ref[0] = p.astype(wei_ref.dtype)   # fully 128-lane-dense store

    # dropout(p=0.2): identity in eval mode.

    # PV matmul directly in (H, BT) orientation -> lane-dense output store.
    out_t = lax.dot_general(v_t, p, (((1,), (1,)), ((), ())),
                            preferred_element_type=jnp.float32)          # (H, BT)
    o_ref[0] = out_t.astype(o_ref.dtype)


def head_forward(x, w_kq, w_vt, *, batch_block=None, collect_wei=False,
                 wei_dtype=jnp.float32):
    """x: (B, T, C); (w_kq, w_vt) from prepare_head_params.

    Returns (out (B,T,H), wei (B,T,T) or None)."""
    B, T, C = x.shape
    H = w_vt.shape[0]
    assert w_kq.shape == (C, 2 * H)
    assert w_vt.shape == (H, C)

    if batch_block is None:
        # Largest divisor of B such that the flattened tile Bb*T stays <= 128
        # (one MXU tile, dense lanes). At B=16, T=8 this is Bb=B -> grid=1,
        # which is what v5e/v6e want; pass batch_block=B//2 to sweep on v7x.
        batch_block = 1
        for cand in range(min(B, max(1, 128 // T)), 0, -1):
            if B % cand == 0:
                batch_block = cand
                break
    assert B % batch_block == 0, "B must be divisible by batch_block"
    Bb = batch_block
    G = B // Bb
    BT = Bb * T

    bias = _block_causal_bias(Bb, T)

    in_specs = [
        pl.BlockSpec((Bb, T, C), lambda g: (g, 0, 0)),
        pl.BlockSpec((C, 2 * H), lambda g: (0, 0)),
        pl.BlockSpec((H, C), lambda g: (0, 0)),
        pl.BlockSpec((BT, BT), lambda g: (0, 0)),
    ]
    out_shapes = [jax.ShapeDtypeStruct((G, H, BT), jnp.float32)]
    out_specs = [pl.BlockSpec((1, H, BT), lambda g: (g, 0, 0))]
    if collect_wei:
        out_shapes.append(jax.ShapeDtypeStruct((G, BT, BT), wei_dtype))
        out_specs.append(pl.BlockSpec((1, BT, BT), lambda g: (g, 0, 0)))

    grid_spec = pltpu.PrefetchScalarGridSpec(
        num_scalar_prefetch=0,
        grid=(G,),
        in_specs=in_specs,
        out_specs=out_specs,
    )

    results = pl.pallas_call(
        _head_kernel,
        grid_spec=grid_spec,
        out_shape=tuple(out_shapes),
        compiler_params=pltpu.CompilerParams(
            dimension_semantics=("parallel",)),
    )(x, w_kq, w_vt, bias)

    if collect_wei:
        out_t, wei_flat = results
    else:
        (out_t,) = results

    # Un-transpose the lane-dense (G, H, Bb*T) slab back to (B, T, H).
    # Wrapper-side layout plumbing on ~8 KiB; not compute.
    out = out_t.reshape(G, H, Bb, T).transpose(0, 2, 3, 1).reshape(B, T, H)

    if collect_wei:
        # Extract the per-batch diagonal (T, T) blocks of the flattened softmax
        # (off-diagonal entries are exactly 0 by the -inf mask).
        w5 = wei_flat.reshape(G, Bb, T, Bb, T)
        wei = jnp.diagonal(w5, axis1=1, axis2=3)      # (G, T, T, Bb)
        wei = jnp.moveaxis(wei, 3, 1).reshape(B, T, T)
        return out, wei
    return out, None


def reference_forward(x, wk, wq, wv):
    """Pure-JAX reference replicating the PyTorch forward (eval mode)."""
    B, T, C = x.shape
    k = x @ wk
    q = x @ wq
    v = x @ wv
    wei = (q @ jnp.swapaxes(k, -2, -1)) * (C ** -0.5)
    mask = jnp.tril(jnp.ones((T, T), dtype=bool))
    wei = jnp.where(mask, wei, -jnp.inf)
    wei = jax.nn.softmax(wei, axis=-1)
    out = wei @ v
    return out, wei


if __name__ == "__main__":
    key = jax.random.PRNGKey(0)
    k1, k2, k3, k4 = jax.random.split(key, 4)

    B, T, C = 16, 8, N_EMBD      # small shapes; C fixed at n_embd = 64
    head_size = 16

    x = jax.random.normal(k1, (B, T, C), dtype=jnp.float32)
    bound = 1.0 / (C ** 0.5)
    wk = jax.random.uniform(k2, (C, head_size), jnp.float32, -bound, bound)
    wq = jax.random.uniform(k3, (C, head_size), jnp.float32, -bound, bound)
    wv = jax.random.uniform(k4, (C, head_size), jnp.float32, -bound, bound)

    # Fuse / transpose the projection weights once (init-time, not per call).
    w_kq, w_vt = prepare_head_params(wk, wq, wv)

    ref_out, ref_wei = reference_forward(x, wk, wq, wv)

    # Hot path: no attention-matrix export, approx-reciprocal normalization.
    out_fast, _ = head_forward(x, w_kq, w_vt)
    out_fast = jax.block_until_ready(out_fast)
    assert jnp.allclose(out_fast, ref_out, atol=2e-3, rtol=2e-3), \
        "output mismatch (hot path)"

    # Export path: exact softmax, attention weights returned
    # (PyTorch weights_matrices.append equivalent).
    out, wei = head_forward(x, w_kq, w_vt, collect_wei=True)
    out = jax.block_until_ready(out)
    wei = jax.block_until_ready(wei)
    assert jnp.allclose(out, ref_out, atol=2e-3, rtol=2e-3), \
        "output mismatch (export path)"
    assert jnp.allclose(wei, ref_wei, atol=2e-3, rtol=2e-3), \
        "attention weights mismatch"

    print("KERNEL_OK")
</pallas_src>

<mosaic_0001>
module attributes {stable_mosaic.version = 11 : i64} {
  func.func @_head_kernel(%arg0: i32, %arg1: memref<16x8x64xf32, #tpu.memory_space<vmem>>, %arg2: memref<64x32xf32, #tpu.memory_space<vmem>>, %arg3: memref<16x64xf32, #tpu.memory_space<vmem>>, %arg4: memref<128x128xf32, #tpu.memory_space<vmem>>, %arg5: memref<1x16x128xf32, #tpu.memory_space<vmem>>) attributes {dimension_semantics = [#tpu.dimension_semantics<parallel>], iteration_bounds = array<i64: 1>, scalar_prefetch = 0 : i64, scratch_operands = 0 : i64, tpu.core_type = #tpu.core_type<tc>, window_params = [{transform_indices = @transform_0, window_bounds = array<i64: 16, 8, 64>}, {pipeline_mode = #tpu.pipeline_mode<synchronous>, transform_indices = @transform_1, window_bounds = array<i64: 64, 32>}, {pipeline_mode = #tpu.pipeline_mode<synchronous>, transform_indices = @transform_2, window_bounds = array<i64: 16, 64>}, {pipeline_mode = #tpu.pipeline_mode<synchronous>, transform_indices = @transform_3, window_bounds = array<i64: 128, 128>}, {transform_indices = @transform_4, window_bounds = array<i64: 1, 16, 128>}]} {
    %c0 = arith.constant 0 : index
    %c0_0 = arith.constant 0 : index
    %c0_1 = arith.constant 0 : index
    %0 = vector.load %arg1[%c0, %c0_0, %c0_1] : memref<16x8x64xf32, #tpu.memory_space<vmem>>, vector<16x8x64xf32>
    %1 = vector.shape_cast %0 : vector<16x8x64xf32> to vector<128x64xf32>
    %c0_2 = arith.constant 0 : index
    %c0_3 = arith.constant 0 : index
    %2 = vector.load %arg2[%c0_2, %c0_3] : memref<64x32xf32, #tpu.memory_space<vmem>>, vector<64x32xf32>
    %cst = arith.constant dense<0.000000e+00> : vector<128x32xf32>
    %3 = tpu.matmul %1, %2, %cst {dimension_numbers = #tpu.dot_dimension_numbers<[1], [0], [0], [1], [0, 0, 1, 1], [], []>} : vector<128x64xf32>, vector<64x32xf32>, vector<128x32xf32> -> vector<128x32xf32>
    %4 = vector.extract_strided_slice %3 {offsets = [0, 0], sizes = [128, 16], strides = [1, 1]} : vector<128x32xf32> to vector<128x16xf32>
    %5 = vector.extract_strided_slice %3 {offsets = [0, 16], sizes = [128, 16], strides = [1, 1]} : vector<128x32xf32> to vector<128x16xf32>
    %c0_4 = arith.constant 0 : index
    %c0_5 = arith.constant 0 : index
    %6 = vector.load %arg3[%c0_4, %c0_5] : memref<16x64xf32, #tpu.memory_space<vmem>>, vector<16x64xf32>
    %cst_6 = arith.constant dense<0.000000e+00> : vector<16x128xf32>
    %7 = tpu.matmul %6, %1, %cst_6 {dimension_numbers = #tpu.dot_dimension_numbers<[1], [1], [0], [0], [0, 0, 1, 0], [], []>} : vector<16x64xf32>, vector<128x64xf32>, vector<16x128xf32> -> vector<16x128xf32>
    %cst_7 = arith.constant dense<0.000000e+00> : vector<128x128xf32>
    %8 = tpu.matmul %5, %4, %cst_7 {dimension_numbers = #tpu.dot_dimension_numbers<[1], [1], [0], [0], [0, 0, 1, 0], [], []>} : vector<128x16xf32>, vector<128x16xf32>, vector<128x128xf32> -> vector<128x128xf32>
    %c0_8 = arith.constant 0 : index
    %c0_9 = arith.constant 0 : index
    %9 = vector.load %arg4[%c0_8, %c0_9] : memref<128x128xf32, #tpu.memory_space<vmem>>, vector<128x128xf32>
    %10 = arith.addf %8, %9 : vector<128x128xf32>
    %cst_10 = arith.constant dense<0xFF800000> : vector<128xf32>
    %11 = vector.multi_reduction <maximumf>, %10, %cst_10 [1] : vector<128x128xf32> to vector<128xf32>
    %12 = vector.shape_cast %11 : vector<128xf32> to vector<128x1xf32>
    %13 = vector.broadcast %12 : vector<128x1xf32> to vector<128x128xf32>
    %14 = arith.subf %10, %13 : vector<128x128xf32>
    %15 = math.exp %14 : vector<128x128xf32>
    %cst_11 = arith.constant dense<0.000000e+00> : vector<128xf32>
    %16 = vector.multi_reduction <add>, %15, %cst_11 [1] : vector<128x128xf32> to vector<128xf32>
    %17 = vector.shape_cast %16 : vector<128xf32> to vector<128x1xf32>
    %18 = tpu.reciprocal %17 {approx = true} : vector<128x1xf32> -> vector<128x1xf32>
    %19 = vector.broadcast %18 : vector<128x1xf32> to vector<128x128xf32>
    %20 = arith.mulf %15, %19 : vector<128x128xf32>
    %cst_12 = arith.constant dense<0.000000e+00> : vector<16x128xf32>
    %21 = tpu.matmul %7, %20, %cst_12 {dimension_numbers = #tpu.dot_dimension_numbers<[1], [1], [0], [0], [0, 0, 1, 0], [], []>} : vector<16x128xf32>, vector<128x128xf32>, vector<16x128xf32> -> vector<16x128xf32>
    %c0_13 = arith.constant 0 : index
    %c0_14 = arith.constant 0 : index
    %c0_15 = arith.constant 0 : index
    %22 = vector.load %arg5[%c0_13, %c0_14, %c0_15] : memref<1x16x128xf32, #tpu.memory_space<vmem>>, vector<1x16x128xf32>
    %23 = vector.shape_cast %22 : vector<1x16x128xf32> to vector<16x128xf32>
    %24 = vector.shape_cast %21 : vector<16x128xf32> to vector<1x16x128xf32>
    tpu.vector_store %arg5[%c0_13, %c0_14, %c0_15], %24 {strides = array<i32>} : memref<1x16x128xf32, #tpu.memory_space<vmem>>, vector<1x16x128xf32>,
    return
  }
  func.func @transform_0(%arg0: i32) -> (i32, i32, i32) {
    %c0_i32 = arith.constant 0 : i32
    %c0_i32_0 = arith.constant 0 : i32
    %c0_i32_1 = arith.constant 0 : i32
    return %arg0, %c0_i32, %c0_i32_0 : i32, i32, i32
  }
  func.func @transform_1(%arg0: i32) -> (i32, i32) {
    %c0_i32 = arith.constant 0 : i32
    %c0_i32_0 = arith.constant 0 : i32
    %c0_i32_1 = arith.constant 0 : i32
    return %c0_i32, %c0_i32_0 : i32, i32
  }
  func.func @transform_2(%arg0: i32) -> (i32, i32) {
    %c0_i32 = arith.constant 0 : i32
    %c0_i32_0 = arith.constant 0 : i32
    %c0_i32_1 = arith.constant 0 : i32
    return %c0_i32, %c0_i32_0 : i32, i32
  }
  func.func @transform_3(%arg0: i32) -> (i32, i32) {
    %c0_i32 = arith.constant 0 : i32
    %c0_i32_0 = arith.constant 0 : i32
    %c0_i32_1 = arith.constant 0 : i32
    return %c0_i32, %c0_i32_0 : i32, i32
  }
  func.func @transform_4(%arg0: i32) -> (i32, i32, i32) {
    %c0_i32 = arith.constant 0 : i32
    %c0_i32_0 = arith.constant 0 : i32
    %c0_i32_1 = arith.constant 0 : i32
    return %arg0, %c0_i32, %c0_i32_0 : i32, i32, i32
  }
}

</mosaic_0001>

<llo_original>
// kernel: tpu_custom_call.1
$region0: #{tpu_custom_call.1}
  #allocation0 [shape = 'u32[]', space=smem, size = 0x4, offset = 0x4, fixed_abs, tag = 'smem constant byte address 0x4 - core index']
  #allocation1 [shape = 'u32[144,128]{1,0:T(1,128)}', space=vmem, size = 0x12000, scoped, tag = 'internal scratch']
  %s0 = inlined_call_operand.hbm [shape: f32[16,8,64], index: 0, kind: input, shape index: {}]
  %s1 = inlined_call_operand.vmem [shape: f32[64,32], index: 1, kind: input, shape index: {}]
  %s2 = inlined_call_operand.vmem [shape: f32[16,64], index: 2, kind: input, shape index: {}]
  %s3 = inlined_call_operand.hbm [shape: f32[128,128], index: 3, kind: input, shape index: {}]
  %s4 = inlined_call_operand.hbm [shape: f32[1,16,128], index: 4, kind: output, shape index: {}]
  %s5 = sld [smem:[#allocation0]]
  $region34: #{tpu_custom_call.1} parent=0
    _
  %s7 = ssub.s32 1, %s5
  %s8 = scalar_select 0, %s7, %s5
  $region1: #{tpu_custom_call.1} parent=0
    #allocation2 [shape = 'u8[65536]{0}', space=vmem, size = 0x10000, scoped, tag = 'input window, operand 0, single buffered']
    #allocation3 [shape = 's32[1]{0}', space=sflag, size = 0x4, scoped, tag = 'scoped memory for tpu_custom_call.1']
    #allocation4 [shape = 's32[1]{0}', space=sflag, size = 0x4, scoped, tag = 'scoped memory for tpu_custom_call.1']
    #allocation5 [shape = 'u8[65536]{0}', space=vmem, size = 0x10000, scoped, tag = 'input window, operand 3, single buffered']
    #allocation6 [shape = 's32[1]{0}', space=sflag, size = 0x4, scoped, tag = 'scoped memory for tpu_custom_call.1']
    #allocation7 [shape = 'u8[8192]{0}', space=vmem, size = 0x2000, scoped, tag = 'output window, operand 0, single buffered']
    %9 = vsyncpa [#allocation3], 0
    %10 = vsyncpa [#allocation6], 0
    %11 = vsyncpa [#allocation4], 0
    // Predicated region
    $region2: #{tpu_custom_call.1} parent=1 // pred_check
      _
    $region3: #{tpu_custom_call.1} parent=1 // pred_check_branch
      %13 = sbr.rel (0) target = $region5
    $region4: #{tpu_custom_call.1} parent=1 // pred_region
      %s15 = ssub.s32 2048, 2048
      %16 = vsyncadd [#allocation3], %s15
      %s17 = sshll.u32 [#allocation2], 4
      %s18 = int_to_ptr.vmem [resolvable:$true] %s17
      %23 = dma.hbm_to_vmem [thread:$0]  %s0, 2048, %s18, [#allocation3], 128, 128, 8
    $region5: #{tpu_custom_call.1} parent=1 // pred_fallthru
      _
    // Predicated region
    $region6: #{tpu_custom_call.1} parent=1 // pred_check
      _
    $region7: #{tpu_custom_call.1} parent=1 // pred_check_branch
      %25 = sbr.rel (0) target = $region9
    $region8: #{tpu_custom_call.1} parent=1 // pred_region
      _
    $region9: #{tpu_custom_call.1} parent=1 // pred_fallthru
      _
    // Predicated region
    $region10: #{tpu_custom_call.1} parent=1 // pred_check
      _
    $region11: #{tpu_custom_call.1} parent=1 // pred_check_branch
      %27 = sbr.rel (0) target = $region13
    $region12: #{tpu_custom_call.1} parent=1 // pred_region
      _
    $region13: #{tpu_custom_call.1} parent=1 // pred_fallthru
      _
    // Predicated region
    $region14: #{tpu_custom_call.1} parent=1 // pred_check
      _
    $region15: #{tpu_custom_call.1} parent=1 // pred_check_branch
      %29 = sbr.rel (0) target = $region17
    $region16: #{tpu_custom_call.1} parent=1 // pred_region
      %s31 = ssub.s32 2048, 2048
      %32 = vsyncadd [#allocation6], %s31
      %s33 = sshll.u32 [#allocation5], 4
      %s34 = int_to_ptr.vmem [resolvable:$true] %s33
      %39 = dma.hbm_to_vmem [thread:$0]  %s3, 2048, %s34, [#allocation6], 128, 128, 8
    $region17: #{tpu_custom_call.1} parent=1 // pred_fallthru
      _
    // Predicated region
    $region18: #{tpu_custom_call.1} parent=1 // pred_check
      _
    $region19: #{tpu_custom_call.1} parent=1 // pred_check_branch
      %41 = sbr.rel (0) target = $region21
    $region20: #{tpu_custom_call.1} parent=1 // pred_region
      %42 = dma.done [#allocation3], 2048
    $region21: #{tpu_custom_call.1} parent=1 // pred_fallthru
      _
    // Predicated region
    $region22: #{tpu_custom_call.1} parent=1 // pred_check
      _
    $region23: #{tpu_custom_call.1} parent=1 // pred_check_branch
      %44 = sbr.rel (0) target = $region25
    $region24: #{tpu_custom_call.1} parent=1 // pred_region
      %45 = dma.done [#allocation6], 2048
    $region25: #{tpu_custom_call.1} parent=1 // pred_fallthru
      _
    %v46 = vld [vmem:[#allocation2] sm:$0xff]
    %v47 = vld [vmem:[#allocation2 + $0x8] sm:$0xff]
    %v48 = vld [vmem:[#allocation2 + $0x10] sm:$0xff]
    %v49 = vld [vmem:[#allocation2 + $0x18] sm:$0xff]
    %v50 = vld [vmem:[#allocation2 + $0x20] sm:$0xff]
    %v51 = vld [vmem:[#allocation2 + $0x28] sm:$0xff]
    %v52 = vld [vmem:[#allocation2 + $0x30] sm:$0xff]
    %v53 = vld [vmem:[#allocation2 + $0x38] sm:$0xff]
    %v54 = vld [vmem:[#allocation2 + $0x40] sm:$0xff]
    %v55 = vld [vmem:[#allocation2 + $0x48] sm:$0xff]
    %v56 = vld [vmem:[#allocation2 + $0x50] sm:$0xff]
    %v57 = vld [vmem:[#allocation2 + $0x58] sm:$0xff]
    %v58 = vld [vmem:[#allocation2 + $0x60] sm:$0xff]
    %v59 = vld [vmem:[#allocation2 + $0x68] sm:$0xff]
    %v60 = vld [vmem:[#allocation2 + $0x70] sm:$0xff]
    %v61 = vld [vmem:[#allocation2 + $0x78] sm:$0xff]
    %v62 = vld [vmem:[%s1] sm:$0xff]
    %v63 = vld [vmem:[%s1 + $0x8] sm:$0xff]
    %v64 = vld [vmem:[%s1 + $0x10] sm:$0xff]
    %v65 = vld [vmem:[%s1 + $0x18] sm:$0xff]
    %v66 = vld [vmem:[%s1 + $0x20] sm:$0xff]
    %v67 = vld [vmem:[%s1 + $0x28] sm:$0xff]
    %v68 = vld [vmem:[%s1 + $0x30] sm:$0xff]
    %v69 = vld [vmem:[%s1 + $0x38] sm:$0xff]
    %vm70 = vcmask 523264
    %v72 = vsel %vm70, %v46, 0
    %v75 = vsel %vm70, %v47, 0
    %v78 = vsel %vm70, %v48, 0
    %v81 = vsel %vm70, %v49, 0
    %v84 = vsel %vm70, %v50, 0
    %v87 = vsel %vm70, %v51, 0
    %v90 = vsel %vm70, %v52, 0
    %v93 = vsel %vm70, %v53, 0
    %v96 = vsel %vm70, %v54, 0
    %v99 = vsel %vm70, %v55, 0
    %v102 = vsel %vm70, %v56, 0
    %v105 = vsel %vm70, %v57, 0
    %v108 = vsel %vm70, %v58, 0
    %v111 = vsel %vm70, %v59, 0
    %v114 = vsel %vm70, %v60, 0
    %v117 = vsel %vm70, %v61, 0
    %119 = vmatprep.subr.mxu0 0.0
    %120 = vmatpush1.msra.mxu0 %v62
    %121 = vmatprep.subr.mxu0 0.0
    %122 = vmatpush1.msra.mxu0 %v63
    %123 = vmatprep.subr.mxu0 0.0
    %124 = vmatpush1.msra.mxu0 %v64
    %125 = vmatprep.subr.mxu0 0.0
    %126 = vmatpush1.msra.mxu0 %v65
    %127 = vmatprep.subr.mxu0 0.0
    %128 = vmatpush1.msra.mxu0 %v66
    %129 = vmatprep.subr.mxu0 0.0
    %130 = vmatpush1.msra.mxu0 %v67
    %131 = vmatprep.subr.mxu0 0.0
    %132 = vmatpush1.msra.mxu0 %v68
    %133 = vmatprep.subr.mxu0 0.0
    %134 = vmatpush1.msra.mxu0 %v69
    %135 = vmatprep.subr.mxu0 0.0
    %136 = vmatpush1.msra.mxu0 0.0
    %137 = vmatprep.subr.mxu0 0.0
    %138 = vmatpush1.msra.mxu0 0.0
    %139 = vmatprep.subr.mxu0 0.0
    %140 = vmatpush1.msra.mxu0 0.0
    %141 = vmatprep.subr.mxu0 0.0
    %142 = vmatpush1.msra.mxu0 0.0
    %143 = vmatprep.subr.mxu0 0.0
    %144 = vmatpush1.msra.mxu0 0.0
    %145 = vmatprep.subr.mxu0 0.0
    %146 = vmatpush1.msra.mxu0 0.0
    %147 = vmatprep.subr.mxu0 0.0
    %148 = vmatpush1.msra.mxu0 0.0
    %149 = vmatprep.subr.mxu0 0.0
    %150 = vmatpush1.msra.mxu0 0.0
    %151 = vmatprep.subr.mxu0 0.0
    %152 = vmatpush1.msra.mxu0 0.0
    %153 = vmatprep.subr.mxu0 0.0
    %154 = vmatpush1.msra.mxu0 0.0
    %155 = vmatprep.subr.mxu0 0.0
    %156 = vmatpush1.msra.mxu0 0.0
    %157 = vmatprep.subr.mxu0 0.0
    %158 = vmatpush1.msra.mxu0 0.0
    %159 = vmatprep.subr.mxu0 0.0
    %160 = vmatpush1.msra.mxu0 0.0
    %161 = vmatprep.subr.mxu0 0.0
    %162 = vmatpush1.msra.mxu0 0.0
    %163 = vmatprep.subr.mxu0 0.0
    %164 = vmatpush1.msra.mxu0 0.0
    %165 = vmatprep.subr.mxu0 0.0
    %166 = vmatpush1.msra.mxu0 0.0
    %167 = vmatprep.subr.mxu0 0.0
    %168 = vmatpush1.msra.mxu0 0.0
    %169 = vmatprep.subr.mxu0 0.0
    %170 = vmatpush1.msra.mxu0 0.0
    %171 = vmatprep.subr.mxu0 0.0
    %172 = vmatpush1.msra.mxu0 0.0
    %173 = vmatprep.subr.mxu0 0.0
    %174 = vmatpush1.msra.mxu0 0.0
    %175 = vmatprep.subr.mxu0 0.0
    %176 = vmatpush1.msra.mxu0 0.0
    %177 = vmatprep.subr.mxu0 0.0
    %178 = vmatpush1.msra.mxu0 0.0
    %179 = vmatprep.subr.mxu0 0.0
    %180 = vmatpush1.msra.mxu0 0.0
    %181 = vmatprep.subr.mxu0 0.0
    %182 = vmatpush1.msra.mxu0 0.0
    %183 = vmatprep.mubr.f32.mxu0 0.0
    %184 = vmatmul.mubr.f32.gmra.mrb[0].mxu0 %v72
    %v185 = vpop.f32.mrb[0].mxu0
    %v186 = vadd.f32 0.0, %v185
    %v187 = vpop.f32.mrb[0].mxu0
    %188 = vmatprep.mubr.f32.mxu0 0.0
    %189 = vmatmul.mubr.f32.gmra.mrb[0].mxu0 %v75
    %v190 = vpop.f32.mrb[0].mxu0
    %v191 = vadd.f32 0.0, %v190
    %v192 = vpop.f32.mrb[0].mxu0
    %193 = vmatprep.mubr.f32.mxu0 0.0
    %194 = vmatmul.mubr.f32.gmra.mrb[0].mxu0 %v78
    %v195 = vpop.f32.mrb[0].mxu0
    %v196 = vadd.f32 0.0, %v195
    %v197 = vpop.f32.mrb[0].mxu0
    %198 = vmatprep.mubr.f32.mxu0 0.0
    %199 = vmatmul.mubr.f32.gmra.mrb[0].mxu0 %v81
    %v200 = vpop.f32.mrb[0].mxu0
    %v201 = vadd.f32 0.0, %v200
    %v202 = vpop.f32.mrb[0].mxu0
    %203 = vmatprep.mubr.f32.mxu0 0.0
    %204 = vmatmul.mubr.f32.gmra.mrb[0].mxu0 %v84
    %v205 = vpop.f32.mrb[0].mxu0
    %v206 = vadd.f32 0.0, %v205
    %v207 = vpop.f32.mrb[0].mxu0
    %208 = vmatprep.mubr.f32.mxu0 0.0
    %209 = vmatmul.mubr.f32.gmra.mrb[0].mxu0 %v87
    %v210 = vpop.f32.mrb[0].mxu0
    %v211 = vadd.f32 0.0, %v210
    %v212 = vpop.f32.mrb[0].mxu0
    %213 = vmatprep.mubr.f32.mxu0 0.0
    %214 = vmatmul.mubr.f32.gmra.mrb[0].mxu0 %v90
    %v215 = vpop.f32.mrb[0].mxu0
    %v216 = vadd.f32 0.0, %v215
    %v217 = vpop.f32.mrb[0].mxu0
    %218 = vmatprep.mubr.f32.mxu0 0.0
    %219 = vmatmul.mubr.f32.gmra.mrb[0].mxu0 %v93
    %v220 = vpop.f32.mrb[0].mxu0
    %v221 = vadd.f32 0.0, %v220
    %v222 = vpop.f32.mrb[0].mxu0
    %223 = vmatprep.mubr.f32.mxu0 0.0
    %224 = vmatmul.mubr.f32.gmra.mrb[0].mxu0 %v96
    %v225 = vpop.f32.mrb[0].mxu0
    %v226 = vadd.f32 0.0, %v225
    %v227 = vpop.f32.mrb[0].mxu0
    %228 = vmatprep.mubr.f32.mxu0 0.0
    %229 = vmatmul.mubr.f32.gmra.mrb[0].mxu0 %v99
    %v230 = vpop.f32.mrb[0].mxu0
    %v231 = vadd.f32 0.0, %v230
    %v232 = vpop.f32.mrb[0].mxu0
    %233 = vmatprep.mubr.f32.mxu0 0.0
    %234 = vmatmul.mubr.f32.gmra.mrb[0].mxu0 %v102
    %v235 = vpop.f32.mrb[0].mxu0
    %v236 = vadd.f32 0.0, %v235
    %v237 = vpop.f32.mrb[0].mxu0
    %238 = vmatprep.mubr.f32.mxu0 0.0
    %239 = vmatmul.mubr.f32.gmra.mrb[0].mxu0 %v105
    %v240 = vpop.f32.mrb[0].mxu0
    %v241 = vadd.f32 0.0, %v240
    %v242 = vpop.f32.mrb[0].mxu0
    %243 = vmatprep.mubr.f32.mxu0 0.0
    %244 = vmatmul.mubr.f32.gmra.mrb[0].mxu0 %v108
    %v245 = vpop.f32.mrb[0].mxu0
    %v246 = vadd.f32 0.0, %v245
    %v247 = vpop.f32.mrb[0].mxu0
    %248 = vmatprep.mubr.f32.mxu0 0.0
    %249 = vmatmul.mubr.f32.gmra.mrb[0].mxu0 %v111
    %v250 = vpop.f32.mrb[0].mxu0
    %v251 = vadd.f32 0.0, %v250
    %v252 = vpop.f32.mrb[0].mxu0
    %253 = vmatprep.mubr.f32.mxu0 0.0
    %254 = vmatmul.mubr.f32.gmra.mrb[0].mxu0 %v114
    %v255 = vpop.f32.mrb[0].mxu0
    %v256 = vadd.f32 0.0, %v255
    %v257 = vpop.f32.mrb[0].mxu0
    %258 = vmatprep.mubr.f32.mxu0 0.0
    %259 = vmatmul.mubr.f32.gmra.mrb[0].mxu0 %v117
    %v260 = vpop.f32.mrb[0].mxu0
    %v261 = vadd.f32 0.0, %v260
    %v262 = vpop.f32.mrb[0].mxu0
    %263 = vdwg.mxu0
    %v264 = vld [vmem:[%s2] sm:$0xff]
    %v265 = vld [vmem:[%s2 + $0x8] sm:$0xff]
    %v267 = vsel %vm70, %v264, 0
    %v270 = vsel %vm70, %v265, 0
    %272 = vmatprep.subr.mxu0 0.0
    %273 = vmatpush1.xpose.msra.mxu0 %v72
    %274 = vmatprep.subr.mxu0 0.0
    %275 = vmatpush1.xpose.msra.mxu0 %v75
    %276 = vmatprep.subr.mxu0 0.0
    %277 = vmatpush1.xpose.msra.mxu0 %v78
    %278 = vmatprep.subr.mxu0 0.0
    %279 = vmatpush1.xpose.msra.mxu0 %v81
    %280 = vmatprep.subr.mxu0 0.0
    %281 = vmatpush1.xpose.msra.mxu0 %v84
    %282 = vmatprep.subr.mxu0 0.0
    %283 = vmatpush1.xpose.msra.mxu0 %v87
    %284 = vmatprep.subr.mxu0 0.0
    %285 = vmatpush1.xpose.msra.mxu0 %v90
    %286 = vmatprep.subr.mxu0 0.0
    %287 = vmatpush1.xpose.msra.mxu0 %v93
    %288 = vmatprep.subr.mxu0 0.0
    %289 = vmatpush1.xpose.msra.mxu0 %v96
    %290 = vmatprep.subr.mxu0 0.0
    %291 = vmatpush1.xpose.msra.mxu0 %v99
    %292 = vmatprep.subr.mxu0 0.0
    %293 = vmatpush1.xpose.msra.mxu0 %v102
    %294 = vmatprep.subr.mxu0 0.0
    %295 = vmatpush1.xpose.msra.mxu0 %v105
    %296 = vmatprep.subr.mxu0 0.0
    %297 = vmatpush1.xpose.msra.mxu0 %v108
    %298 = vmatprep.subr.mxu0 0.0
    %299 = vmatpush1.xpose.msra.mxu0 %v111
    %300 = vmatprep.subr.mxu0 0.0
    %301 = vmatpush1.xpose.msra.mxu0 %v114
    %302 = vmatprep.subr.mxu0 0.0
    %303 = vmatpush1.xpose.msra.mxu0 %v117
    %304 = vmatprep.subr.mxu0 0.0
    %305 = vmatpush1.xpose.msra.mxu0 0.0
    %306 = vmatprep.subr.mxu0 0.0
    %307 = vmatpush1.xpose.msra.mxu0 0.0
    %308 = vmatprep.subr.mxu0 0.0
    %309 = vmatpush1.xpose.msra.mxu0 0.0
    %310 = vmatprep.subr.mxu0 0.0
    %311 = vmatpush1.xpose.msra.mxu0 0.0
    %312 = vmatprep.subr.mxu0 0.0
    %313 = vmatpush1.xpose.msra.mxu0 0.0
    %314 = vmatprep.subr.mxu0 0.0
    %315 = vmatpush1.xpose.msra.mxu0 0.0
    %316 = vmatprep.subr.mxu0 0.0
    %317 = vmatpush1.xpose.msra.mxu0 0.0
    %318 = vmatprep.subr.mxu0 0.0
    %319 = vmatpush1.xpose.msra.mxu0 0.0
    %320 = vmatprep.subr.mxu0 0.0
    %321 = vmatpush1.xpose.msra.mxu0 0.0
    %322 = vmatprep.subr.mxu0 0.0
    %323 = vmatpush1.xpose.msra.mxu0 0.0
    %324 = vmatprep.subr.mxu0 0.0
    %325 = vmatpush1.xpose.msra.mxu0 0.0
    %326 = vmatprep.subr.mxu0 0.0
    %327 = vmatpush1.xpose.msra.mxu0 0.0
    %328 = vmatprep.subr.mxu0 0.0
    %329 = vmatpush1.xpose.msra.mxu0 0.0
    %330 = vmatprep.subr.mxu0 0.0
    %331 = vmatpush1.xpose.msra.mxu0 0.0
    %332 = vmatprep.subr.mxu0 0.0
    %333 = vmatpush1.xpose.msra.mxu0 0.0
    %334 = vmatprep.subr.mxu0 0.0
    %335 = vmatpush1.xpose.msra.mxu0 0.0
    %336 = vmatprep.mubr.f32.mxu0 0.0
    %337 = vmatmul.mubr.f32.gmra.mrb[0].mxu0 %v267
    %v338 = vpop.f32.mrb[0].mxu0
    %v339 = vadd.f32 0.0, %v338
    %v340 = vpop.f32.mrb[0].mxu0
    %341 = vmatprep.mubr.f32.mxu0 0.0
    %342 = vmatmul.mubr.f32.gmra.mrb[0].mxu0 %v270
    %v343 = vpop.f32.mrb[0].mxu0
    %v344 = vadd.f32 0.0, %v343
    %v345 = vpop.f32.mrb[0].mxu0
    %346 = vdwg.mxu0
    %v347 = vld [vmem:[#allocation5] sm:$0xff]
    %v348 = vld [vmem:[#allocation5 + $0x8] sm:$0xff]
    %v349 = vld [vmem:[#allocation5 + $0x10] sm:$0xff]
    %v350 = vld [vmem:[#allocation5 + $0x18] sm:$0xff]
    %v351 = vld [vmem:[#allocation5 + $0x20] sm:$0xff]
    %v352 = vld [vmem:[#allocation5 + $0x28] sm:$0xff]
    %v353 = vld [vmem:[#allocation5 + $0x30] sm:$0xff]
    %v354 = vld [vmem:[#allocation5 + $0x38] sm:$0xff]
    %v355 = vld [vmem:[#allocation5 + $0x40] sm:$0xff]
    %v356 = vld [vmem:[#allocation5 + $0x48] sm:$0xff]
    %v357 = vld [vmem:[#allocation5 + $0x50] sm:$0xff]
    %v358 = vld [vmem:[#allocation5 + $0x58] sm:$0xff]
    %v359 = vld [vmem:[#allocation5 + $0x60] sm:$0xff]
    %v360 = vld [vmem:[#allocation5 + $0x68] sm:$0xff]
    %v361 = vld [vmem:[#allocation5 + $0x70] sm:$0xff]
    %v362 = vld [vmem:[#allocation5 + $0x78] sm:$0xff]
    %379 = vrot.lane.b32.xlu0 %v186, 112
    %v380 = vpop.permute.xlu0 %379
    %381 = vrot.lane.b32.xlu0 %v191, 112
    %v382 = vpop.permute.xlu0 %381
    %383 = vrot.lane.b32.xlu0 %v196, 112
    %v384 = vpop.permute.xlu0 %383
    %385 = vrot.lane.b32.xlu0 %v201, 112
    %v386 = vpop.permute.xlu0 %385
    %387 = vrot.lane.b32.xlu0 %v206, 112
    %v388 = vpop.permute.xlu0 %387
    %389 = vrot.lane.b32.xlu0 %v211, 112
    %v390 = vpop.permute.xlu0 %389
    %391 = vrot.lane.b32.xlu0 %v216, 112
    %v392 = vpop.permute.xlu0 %391
    %393 = vrot.lane.b32.xlu0 %v221, 112
    %v394 = vpop.permute.xlu0 %393
    %395 = vrot.lane.b32.xlu0 %v226, 112
    %v396 = vpop.permute.xlu0 %395
    %397 = vrot.lane.b32.xlu0 %v231, 112
    %v398 = vpop.permute.xlu0 %397
    %399 = vrot.lane.b32.xlu0 %v236, 112
    %v400 = vpop.permute.xlu0 %399
    %401 = vrot.lane.b32.xlu0 %v241, 112
    %v402 = vpop.permute.xlu0 %401
    %403 = vrot.lane.b32.xlu0 %v246, 112
    %v404 = vpop.permute.xlu0 %403
    %405 = vrot.lane.b32.xlu0 %v251, 112
    %v406 = vpop.permute.xlu0 %405
    %407 = vrot.lane.b32.xlu0 %v256, 112
    %v408 = vpop.permute.xlu0 %407
    %409 = vrot.lane.b32.xlu0 %v261, 112
    %v410 = vpop.permute.xlu0 %409
    %vm411 = vcmask 130048
    %v412 = vsel %vm411, %v380, 0
    %v414 = vsel %vm411, %v382, 0
    %v416 = vsel %vm411, %v384, 0
    %v418 = vsel %vm411, %v386, 0
    %v420 = vsel %vm411, %v388, 0
    %v422 = vsel %vm411, %v390, 0
    %v424 = vsel %vm411, %v392, 0
    %v426 = vsel %vm411, %v394, 0
    %v428 = vsel %vm411, %v396, 0
    %v430 = vsel %vm411, %v398, 0
    %v432 = vsel %vm411, %v400, 0
    %v434 = vsel %vm411, %v402, 0
    %v436 = vsel %vm411, %v404, 0
    %v438 = vsel %vm411, %v406, 0
    %v440 = vsel %vm411, %v408, 0
    %v442 = vsel %vm411, %v410, 0
    %v444 = vsel %vm411, %v186, 0
    %v446 = vsel %vm411, %v191, 0
    %v448 = vsel %vm411, %v196, 0
    %v450 = vsel %vm411, %v201, 0
    %v452 = vsel %vm411, %v206, 0
    %v454 = vsel %vm411, %v211, 0
    %v456 = vsel %vm411, %v216, 0
    %v458 = vsel %vm411, %v221, 0
    %v460 = vsel %vm411, %v226, 0
    %v462 = vsel %vm411, %v231, 0
    %v464 = vsel %vm411, %v236, 0
    %v466 = vsel %vm411, %v241, 0
    %v468 = vsel %vm411, %v246, 0
    %v470 = vsel %vm411, %v251, 0
    %v472 = vsel %vm411, %v256, 0
    %v474 = vsel %vm411, %v261, 0
    %476 = vmatprep.subr.mxu0 0.0
    %477 = vmatpush1.xpose.msra.mxu0 %v444
    %478 = vmatprep.subr.mxu0 0.0
    %479 = vmatpush1.xpose.msra.mxu0 %v446
    %480 = vmatprep.subr.mxu0 0.0
    %481 = vmatpush1.xpose.msra.mxu0 %v448
    %482 = vmatprep.subr.mxu0 0.0
    %483 = vmatpush1.xpose.msra.mxu0 %v450
    %484 = vmatprep.subr.mxu0 0.0
    %485 = vmatpush1.xpose.msra.mxu0 %v452
    %486 = vmatprep.subr.mxu0 0.0
    %487 = vmatpush1.xpose.msra.mxu0 %v454
    %488 = vmatprep.subr.mxu0 0.0
    %489 = vmatpush1.xpose.msra.mxu0 %v456
    %490 = vmatprep.subr.mxu0 0.0
    %491 = vmatpush1.xpose.msra.mxu0 %v458
    %492 = vmatprep.subr.mxu0 0.0
    %493 = vmatpush1.xpose.msra.mxu0 %v460
    %494 = vmatprep.subr.mxu0 0.0
    %495 = vmatpush1.xpose.msra.mxu0 %v462
    %496 = vmatprep.subr.mxu0 0.0
    %497 = vmatpush1.xpose.msra.mxu0 %v464
    %498 = vmatprep.subr.mxu0 0.0
    %499 = vmatpush1.xpose.msra.mxu0 %v466
    %500 = vmatprep.subr.mxu0 0.0
    %501 = vmatpush1.xpose.msra.mxu0 %v468
    %502 = vmatprep.subr.mxu0 0.0
    %503 = vmatpush1.xpose.msra.mxu0 %v470
    %504 = vmatprep.subr.mxu0 0.0
    %505 = vmatpush1.xpose.msra.mxu0 %v472
    %506 = vmatprep.subr.mxu0 0.0
    %507 = vmatpush1.xpose.msra.mxu0 %v474
    %508 = vmatprep.subr.mxu0 0.0
    %509 = vmatpush1.xpose.msra.mxu0 0.0
    %510 = vmatprep.subr.mxu0 0.0
    %511 = vmatpush1.xpose.msra.mxu0 0.0
    %512 = vmatprep.subr.mxu0 0.0
    %513 = vmatpush1.xpose.msra.mxu0 0.0
    %514 = vmatprep.subr.mxu0 0.0
    %515 = vmatpush1.xpose.msra.mxu0 0.0
    %516 = vmatprep.subr.mxu0 0.0
    %517 = vmatpush1.xpose.msra.mxu0 0.0
    %518 = vmatprep.subr.mxu0 0.0
    %519 = vmatpush1.xpose.msra.mxu0 0.0
    %520 = vmatprep.subr.mxu0 0.0
    %521 = vmatpush1.xpose.msra.mxu0 0.0
    %522 = vmatprep.subr.mxu0 0.0
    %523 = vmatpush1.xpose.msra.mxu0 0.0
    %524 = vmatprep.subr.mxu0 0.0
    %525 = vmatpush1.xpose.msra.mxu0 0.0
    %526 = vmatprep.subr.mxu0 0.0
    %527 = vmatpush1.xpose.msra.mxu0 0.0
    %528 = vmatprep.subr.mxu0 0.0
    %529 = vmatpush1.xpose.msra.mxu0 0.0
    %530 = vmatprep.subr.mxu0 0.0
    %531 = vmatpush1.xpose.msra.mxu0 0.0
    %532 = vmatprep.subr.mxu0 0.0
    %533 = vmatpush1.xpose.msra.mxu0 0.0
    %534 = vmatprep.subr.mxu0 0.0
    %535 = vmatpush1.xpose.msra.mxu0 0.0
    %536 = vmatprep.subr.mxu0 0.0
    %537 = vmatpush1.xpose.msra.mxu0 0.0
    %538 = vmatprep.subr.mxu0 0.0
    %539 = vmatpush1.xpose.msra.mxu0 0.0
    %540 = vmatprep.mubr.f32.mxu0 0.0
    %541 = vmatmul.mubr.f32.gmra.mrb[0].mxu0 %v412
    %v542 = vpop.f32.mrb[0].mxu0
    %v543 = vadd.f32 %v347, %v542
    %v544 = vpop.f32.mrb[0].mxu0
    %545 = vmatprep.mubr.f32.mxu0 0.0
    %546 = vmatmul.mubr.f32.gmra.mrb[0].mxu0 %v414
    %v547 = vpop.f32.mrb[0].mxu0
    %v548 = vadd.f32 %v348, %v547
    %v549 = vpop.f32.mrb[0].mxu0
    %550 = vmatprep.mubr.f32.mxu0 0.0
    %551 = vmatmul.mubr.f32.gmra.mrb[0].mxu0 %v416
    %v552 = vpop.f32.mrb[0].mxu0
    %v553 = vadd.f32 %v349, %v552
    %v554 = vpop.f32.mrb[0].mxu0
    %555 = vmatprep.mubr.f32.mxu0 0.0
    %556 = vmatmul.mubr.f32.gmra.mrb[0].mxu0 %v418
    %v557 = vpop.f32.mrb[0].mxu0
    %v558 = vadd.f32 %v350, %v557
    %v559 = vpop.f32.mrb[0].mxu0
    %560 = vmatprep.mubr.f32.mxu0 0.0
    %561 = vmatmul.mubr.f32.gmra.mrb[0].mxu0 %v420
    %v562 = vpop.f32.mrb[0].mxu0
    %v563 = vadd.f32 %v351, %v562
    %v564 = vpop.f32.mrb[0].mxu0
    %565 = vmatprep.mubr.f32.mxu0 0.0
    %566 = vmatmul.mubr.f32.gmra.mrb[0].mxu0 %v422
    %v567 = vpop.f32.mrb[0].mxu0
    %v568 = vadd.f32 %v352, %v567
    %v569 = vpop.f32.mrb[0].mxu0
    %570 = vmatprep.mubr.f32.mxu0 0.0
    %571 = vmatmul.mubr.f32.gmra.mrb[0].mxu0 %v424
    %v572 = vpop.f32.mrb[0].mxu0
    %v573 = vadd.f32 %v353, %v572
    %v574 = vpop.f32.mrb[0].mxu0
    %575 = vmatprep.mubr.f32.mxu0 0.0
    %576 = vmatmul.mubr.f32.gmra.mrb[0].mxu0 %v426
    %v577 = vpop.f32.mrb[0].mxu0
    %v578 = vadd.f32 %v354, %v577
    %v579 = vpop.f32.mrb[0].mxu0
    %580 = vmatprep.mubr.f32.mxu0 0.0
    %581 = vmatmul.mubr.f32.gmra.mrb[0].mxu0 %v428
    %v582 = vpop.f32.mrb[0].mxu0
    %v583 = vadd.f32 %v355, %v582
    %v584 = vpop.f32.mrb[0].mxu0
    %585 = vmatprep.mubr.f32.mxu0 0.0
    %586 = vmatmul.mubr.f32.gmra.mrb[0].mxu0 %v430
    %v587 = vpop.f32.mrb[0].mxu0
    %v588 = vadd.f32 %v356, %v587
    %v589 = vpop.f32.mrb[0].mxu0
    %590 = vmatprep.mubr.f32.mxu0 0.0
    %591 = vmatmul.mubr.f32.gmra.mrb[0].mxu0 %v432
    %v592 = vpop.f32.mrb[0].mxu0
    %v593 = vadd.f32 %v357, %v592
    %v594 = vpop.f32.mrb[0].mxu0
    %595 = vmatprep.mubr.f32.mxu0 0.0
    %596 = vmatmul.mubr.f32.gmra.mrb[0].mxu0 %v434
    %v597 = vpop.f32.mrb[0].mxu0
    %v598 = vadd.f32 %v358, %v597
    %v599 = vpop.f32.mrb[0].mxu0
    %600 = vmatprep.mubr.f32.mxu0 0.0
    %601 = vmatmul.mubr.f32.gmra.mrb[0].mxu0 %v436
    %v602 = vpop.f32.mrb[0].mxu0
    %v603 = vadd.f32 %v359, %v602
    %v604 = vpop.f32.mrb[0].mxu0
    %605 = vmatprep.mubr.f32.mxu0 0.0
    %606 = vmatmul.mubr.f32.gmra.mrb[0].mxu0 %v438
    %v607 = vpop.f32.mrb[0].mxu0
    %v608 = vadd.f32 %v360, %v607
    %v609 = vpop.f32.mrb[0].mxu0
    %610 = vmatprep.mubr.f32.mxu0 0.0
    %611 = vmatmul.mubr.f32.gmra.mrb[0].mxu0 %v440
    %v612 = vpop.f32.mrb[0].mxu0
    %v613 = vadd.f32 %v361, %v612
    %v614 = vpop.f32.mrb[0].mxu0
    %615 = vmatprep.mubr.f32.mxu0 0.0
    %616 = vmatmul.mubr.f32.gmra.mrb[0].mxu0 %v442
    %v617 = vpop.f32.mrb[0].mxu0
    %v618 = vadd.f32 %v362, %v617
    %v619 = vpop.f32.mrb[0].mxu0
    %620 = vdwg.mxu0
    %621 = vmax.xlane.f32.xlu0 %v543
    %v622 = vpop.xlane.xlu0 %621
    %623 = vmax.xlane.f32.xlu0 %v548
    %v624 = vpop.xlane.xlu0 %623
    %625 = vmax.xlane.f32.xlu0 %v553
    %v626 = vpop.xlane.xlu0 %625
    %627 = vmax.xlane.f32.xlu0 %v558
    %v628 = vpop.xlane.xlu0 %627
    %629 = vmax.xlane.f32.xlu0 %v563
    %v630 = vpop.xlane.xlu0 %629
    %631 = vmax.xlane.f32.xlu0 %v568
    %v632 = vpop.xlane.xlu0 %631
    %633 = vmax.xlane.f32.xlu0 %v573
    %v634 = vpop.xlane.xlu0 %633
    %635 = vmax.xlane.f32.xlu0 %v578
    %v636 = vpop.xlane.xlu0 %635
    %637 = vmax.xlane.f32.xlu0 %v583
    %v638 = vpop.xlane.xlu0 %637
    %639 = vmax.xlane.f32.xlu0 %v588
    %v640 = vpop.xlane.xlu0 %639
    %641 = vmax.xlane.f32.xlu0 %v593
    %v642 = vpop.xlane.xlu0 %641
    %643 = vmax.xlane.f32.xlu0 %v598
    %v644 = vpop.xlane.xlu0 %643
    %645 = vmax.xlane.f32.xlu0 %v603
    %v646 = vpop.xlane.xlu0 %645
    %647 = vmax.xlane.f32.xlu0 %v608
    %v648 = vpop.xlane.xlu0 %647
    %649 = vmax.xlane.f32.xlu0 %v613
    %v650 = vpop.xlane.xlu0 %649
    %651 = vmax.xlane.f32.xlu0 %v618
    %v652 = vpop.xlane.xlu0 %651
    %v653 = vsub.f32 %v543, %v622
    %v654 = vsub.f32 %v548, %v624
    %v655 = vsub.f32 %v553, %v626
    %v656 = vsub.f32 %v558, %v628
    %v657 = vsub.f32 %v563, %v630
    %v658 = vsub.f32 %v568, %v632
    %v659 = vsub.f32 %v573, %v634
    %v660 = vsub.f32 %v578, %v636
    %v661 = vsub.f32 %v583, %v638
    %v662 = vsub.f32 %v588, %v640
    %v663 = vsub.f32 %v593, %v642
    %v664 = vsub.f32 %v598, %v644
    %v665 = vsub.f32 %v603, %v646
    %v666 = vsub.f32 %v608, %v648
    %v667 = vsub.f32 %v613, %v650
    %v668 = vsub.f32 %v618, %v652
    %v669 = vmul.f32 %v653, 1.442695
    %v670 = vpow.pop %v669
    %v671 = vmul.f32 %v654, 1.442695
    %v672 = vpow.pop %v671
    %v673 = vmul.f32 %v655, 1.442695
    %v674 = vpow.pop %v673
    %v675 = vmul.f32 %v656, 1.442695
    %v676 = vpow.pop %v675
    %v677 = vmul.f32 %v657, 1.442695
    %v678 = vpow.pop %v677
    %v679 = vmul.f32 %v658, 1.442695
    %v680 = vpow.pop %v679
    %v681 = vmul.f32 %v659, 1.442695
    %v682 = vpow.pop %v681
    %v683 = vmul.f32 %v660, 1.442695
    %v684 = vpow.pop %v683
    %v685 = vmul.f32 %v661, 1.442695
    %v686 = vpow.pop %v685
    %v687 = vmul.f32 %v662, 1.442695
    %v688 = vpow.pop %v687
    %v689 = vmul.f32 %v663, 1.442695
    %v690 = vpow.pop %v689
    %v691 = vmul.f32 %v664, 1.442695
    %v692 = vpow.pop %v691
    %v693 = vmul.f32 %v665, 1.442695
    %v694 = vpow.pop %v693
    %v695 = vmul.f32 %v666, 1.442695
    %v696 = vpow.pop %v695
    %v697 = vmul.f32 %v667, 1.442695
    %v698 = vpow.pop %v697
    %v699 = vmul.f32 %v668, 1.442695
    %v700 = vpow.pop %v699
    %701 = vadd.xlane.f32.xlu0 %v670
    %v702 = vpop.xlane.xlu0 %701
    %703 = vadd.xlane.f32.xlu0 %v672
    %v704 = vpop.xlane.xlu0 %703
    %705 = vadd.xlane.f32.xlu0 %v674
    %v706 = vpop.xlane.xlu0 %705
    %707 = vadd.xlane.f32.xlu0 %v676
    %v708 = vpop.xlane.xlu0 %707
    %709 = vadd.xlane.f32.xlu0 %v678
    %v710 = vpop.xlane.xlu0 %709
    %711 = vadd.xlane.f32.xlu0 %v680
    %v712 = vpop.xlane.xlu0 %711
    %713 = vadd.xlane.f32.xlu0 %v682
    %v714 = vpop.xlane.xlu0 %713
    %715 = vadd.xlane.f32.xlu0 %v684
    %v716 = vpop.xlane.xlu0 %715
    %717 = vadd.xlane.f32.xlu0 %v686
    %v718 = vpop.xlane.xlu0 %717
    %719 = vadd.xlane.f32.xlu0 %v688
    %v720 = vpop.xlane.xlu0 %719
    %721 = vadd.xlane.f32.xlu0 %v690
    %v722 = vpop.xlane.xlu0 %721
    %723 = vadd.xlane.f32.xlu0 %v692
    %v724 = vpop.xlane.xlu0 %723
    %725 = vadd.xlane.f32.xlu0 %v694
    %v726 = vpop.xlane.xlu0 %725
    %727 = vadd.xlane.f32.xlu0 %v696
    %v728 = vpop.xlane.xlu0 %727
    %729 = vadd.xlane.f32.xlu0 %v698
    %v730 = vpop.xlane.xlu0 %729
    %731 = vadd.xlane.f32.xlu0 %v700
    %v732 = vpop.xlane.xlu0 %731
    %v733 = vrcp.pop %v702
    %v734 = vrcp.pop %v704
    %v735 = vrcp.pop %v706
    %v736 = vrcp.pop %v708
    %v737 = vrcp.pop %v710
    %v738 = vrcp.pop %v712
    %v739 = vrcp.pop %v714
    %v740 = vrcp.pop %v716
    %v741 = vrcp.pop %v718
    %v742 = vrcp.pop %v720
    %v743 = vrcp.pop %v722
    %v744 = vrcp.pop %v724
    %v745 = vrcp.pop %v726
    %v746 = vrcp.pop %v728
    %v747 = vrcp.pop %v730
    %v748 = vrcp.pop %v732
    %v749 = vmul.f32 %v670, %v733
    %v750 = vmul.f32 %v672, %v734
    %v751 = vmul.f32 %v674, %v735
    %v752 = vmul.f32 %v676, %v736
    %v753 = vmul.f32 %v678, %v737
    %v754 = vmul.f32 %v680, %v738
    %v755 = vmul.f32 %v682, %v739
    %v756 = vmul.f32 %v684, %v740
    %v757 = vmul.f32 %v686, %v741
    %v758 = vmul.f32 %v688, %v742
    %v759 = vmul.f32 %v690, %v743
    %v760 = vmul.f32 %v692, %v744
    %v761 = vmul.f32 %v694, %v745
    %v762 = vmul.f32 %v696, %v746
    %v763 = vmul.f32 %v698, %v747
    %v764 = vmul.f32 %v700, %v748
    %765 = vmatprep.subr.mxu0 0.0
    %766 = vmatpush1.xpose.msra.mxu0 %v749
    %767 = vmatprep.subr.mxu0 0.0
    %768 = vmatpush1.xpose.msra.mxu0 %v750
    %769 = vmatprep.subr.mxu0 0.0
    %770 = vmatpush1.xpose.msra.mxu0 %v751
    %771 = vmatprep.subr.mxu0 0.0
    %772 = vmatpush1.xpose.msra.mxu0 %v752
    %773 = vmatprep.subr.mxu0 0.0
    %774 = vmatpush1.xpose.msra.mxu0 %v753
    %775 = vmatprep.subr.mxu0 0.0
    %776 = vmatpush1.xpose.msra.mxu0 %v754
    %777 = vmatprep.subr.mxu0 0.0
    %778 = vmatpush1.xpose.msra.mxu0 %v755
    %779 = vmatprep.subr.mxu0 0.0
    %780 = vmatpush1.xpose.msra.mxu0 %v756
    %781 = vmatprep.subr.mxu0 0.0
    %782 = vmatpush1.xpose.msra.mxu0 %v757
    %783 = vmatprep.subr.mxu0 0.0
    %784 = vmatpush1.xpose.msra.mxu0 %v758
    %785 = vmatprep.subr.mxu0 0.0
    %786 = vmatpush1.xpose.msra.mxu0 %v759
    %787 = vmatprep.subr.mxu0 0.0
    %788 = vmatpush1.xpose.msra.mxu0 %v760
    %789 = vmatprep.subr.mxu0 0.0
    %790 = vmatpush1.xpose.msra.mxu0 %v761
    %791 = vmatprep.subr.mxu0 0.0
    %792 = vmatpush1.xpose.msra.mxu0 %v762
    %793 = vmatprep.subr.mxu0 0.0
    %794 = vmatpush1.xpose.msra.mxu0 %v763
    %795 = vmatprep.subr.mxu0 0.0
    %796 = vmatpush1.xpose.msra.mxu0 %v764
    %797 = vmatprep.subr.mxu0 0.0
    %798 = vmatpush1.xpose.msra.mxu0 0.0
    %799 = vmatprep.subr.mxu0 0.0
    %800 = vmatpush1.xpose.msra.mxu0 0.0
    %801 = vmatprep.subr.mxu0 0.0
    %802 = vmatpush1.xpose.msra.mxu0 0.0
    %803 = vmatprep.subr.mxu0 0.0
    %804 = vmatpush1.xpose.msra.mxu0 0.0
    %805 = vmatprep.subr.mxu0 0.0
    %806 = vmatpush1.xpose.msra.mxu0 0.0
    %807 = vmatprep.subr.mxu0 0.0
    %808 = vmatpush1.xpose.msra.mxu0 0.0
    %809 = vmatprep.subr.mxu0 0.0
    %810 = vmatpush1.xpose.msra.mxu0 0.0
    %811 = vmatprep.subr.mxu0 0.0
    %812 = vmatpush1.xpose.msra.mxu0 0.0
    %813 = vmatprep.subr.mxu0 0.0
    %814 = vmatpush1.xpose.msra.mxu0 0.0
    %815 = vmatprep.subr.mxu0 0.0
    %816 = vmatpush1.xpose.msra.mxu0 0.0
    %817 = vmatprep.subr.mxu0 0.0
    %818 = vmatpush1.xpose.msra.mxu0 0.0
    %819 = vmatprep.subr.mxu0 0.0
    %820 = vmatpush1.xpose.msra.mxu0 0.0
    %821 = vmatprep.subr.mxu0 0.0
    %822 = vmatpush1.xpose.msra.mxu0 0.0
    %823 = vmatprep.subr.mxu0 0.0
    %824 = vmatpush1.xpose.msra.mxu0 0.0
    %825 = vmatprep.subr.mxu0 0.0
    %826 = vmatpush1.xpose.msra.mxu0 0.0
    %827 = vmatprep.subr.mxu0 0.0
    %828 = vmatpush1.xpose.msra.mxu0 0.0
    %829 = vmatprep.mubr.f32.mxu0 0.0
    %830 = vmatmul.mubr.f32.gmra.mrb[0].mxu0 %v339
    %v831 = vpop.f32.mrb[0].mxu0
    %v832 = vadd.f32 0.0, %v831
    %v833 = vpop.f32.mrb[0].mxu0
    %834 = vmatprep.mubr.f32.mxu0 0.0
    %835 = vmatmul.mubr.f32.gmra.mrb[0].mxu0 %v344
    %v836 = vpop.f32.mrb[0].mxu0
    %v837 = vadd.f32 0.0, %v836
    %v838 = vpop.f32.mrb[0].mxu0
    %839 = vdwg.mxu0
    %840 = vst [vmem:[#allocation7] sm:$0xff] %v832
    %841 = vst [vmem:[#allocation7 + $0x8] sm:$0xff] %v837
    // Predicated region
    $region26: #{tpu_custom_call.1} parent=1 // pred_check
      _
    $region27: #{tpu_custom_call.1} parent=1 // pred_check_branch
      %843 = sbr.rel (0) target = $region29
    $region28: #{tpu_custom_call.1} parent=1 // pred_region
      %s845 = ssub.s32 256, 256
      %846 = vsyncadd [#allocation4], %s845
      %s847 = sshll.u32 [#allocation7], 4
      %s848 = int_to_ptr.vmem [resolvable:$true] %s847
      %853 = dma.vmem_to_hbm [thread:$0]  %s848, 256, %s4, [#allocation4], 128, 128, 8
    $region29: #{tpu_custom_call.1} parent=1 // pred_fallthru
      _
    // Predicated region
    $region30: #{tpu_custom_call.1} parent=1 // pred_check
      _
    $region31: #{tpu_custom_call.1} parent=1 // pred_check_branch
      %855 = sbr.rel (0) target = $region33
    $region32: #{tpu_custom_call.1} parent=1 // pred_region
      %856 = dma.done [#allocation4], 256
    $region33: #{tpu_custom_call.1} parent=1 // pred_fallthru
      _
    %857 = vsyncpa [#allocation3], 1
    %858 = vsyncpa [#allocation6], 1
    %859 = vsyncpa [#allocation4], 1

</llo_original>
